<compile_context>
chip_gen: v5e
topology: v5e:2x2
jax: 0.10.0
libtpu: 0.0.40
codegen_flags: <defaults>
</compile_context>

<pallas_src>
import jax
import jax.numpy as jnp
from jax.experimental import pallas as pl
from jax.experimental.pallas import tpu as pltpu

H1, H2 = 128, 256


def _round_up(x, m):
    return (x + m - 1) // m * m


def _policy_kernel(x_ref, w1_ref, b1_ref, w2_ref, b2_ref, w3_ref, b3_ref, o_ref):
    # One batch tile per grid step. Weights/biases use constant index_maps so they stay
    # resident in VMEM across the whole grid (DMA'd from HBM once).
    x = x_ref[...].astype(jnp.bfloat16)                       # no-op if x is already bf16
    h1 = jnp.dot(x, w1_ref[...],
                 preferred_element_type=jnp.float32)          # (TB, 128)
    h1 = jnp.maximum(h1 + b1_ref[...], 0.0)                   # bias/ReLU in f32
    h2 = jnp.dot(h1.astype(jnp.bfloat16), w2_ref[...],
                 preferred_element_type=jnp.float32)          # (TB, 256)
    h2 = jnp.maximum(h2 + b2_ref[...], 0.0)
    h3 = jnp.dot(h2.astype(jnp.bfloat16), w3_ref[...],
                 preferred_element_type=jnp.float32)          # (TB, A) — A=8, narrow lanes
    # Narrow masked store in VMEM, but HBM writeback is only A*4 B/row (vs 512 B/row when
    # padded to 128 lanes); writeback bytes dominate the masked-vst penalty here.
    o_ref[...] = jnp.tanh(h3 + b3_ref[...])


def pack_params(params):
    """One-time param packing (hoisted out of the per-call forward path):
    weights -> bf16 MXU operands, biases -> (1, dout) f32."""
    w1, b1, w2, b2, w3, b3 = params
    as_bias = lambda b: jnp.asarray(b, jnp.float32).reshape(1, -1)
    return (w1.astype(jnp.bfloat16), as_bias(b1),
            w2.astype(jnp.bfloat16), as_bias(b2),
            w3.astype(jnp.bfloat16), as_bias(b3))


def _choose_batch_tile(B, batch_tile):
    if B <= 1024:
        # Small/medium batches: a single grid step (per-step overhead paid once).
        return max(8, _round_up(B, 8))
    # Large rollout batches: big tiles amortize the ~0.35 us/step overhead, but keep an even
    # number of >= 2 grid steps so "parallel" shards the batch across both v7x TensorCores.
    n_steps = max(2, pl.cdiv(B, batch_tile))
    n_steps += n_steps % 2
    return _round_up(pl.cdiv(B, n_steps), 8)


def continuous_policy_forward(x, packed_params, *, batch_tile=2048):
    """Pallas forward of ContinuousPolicy with std=None: returns tanh(mlp(x)).

    `packed_params` must come from pack_params() (bf16 weights, (1, dout) f32 biases)."""
    w1, b1, w2, b2, w3, b3 = packed_params
    B, S = x.shape
    A = w3.shape[1]

    tb = _choose_batch_tile(B, batch_tile)
    grid = (pl.cdiv(B, tb),)   # ragged last block handled by Pallas (clipped DMAs);
                               # no wrapper-side x pad or output slice passes.

    def resident(a):  # full array, constant block index -> stays in VMEM across the grid
        return pl.BlockSpec(a.shape, lambda i, _nd=a.ndim: (0,) * _nd)

    flops = 2 * B * (S * H1 + H1 * H2 + H2 * A)
    bytes_accessed = (
        x.size * x.dtype.itemsize
        + (w1.size + w2.size + w3.size) * 2
        + (b1.size + b2.size + b3.size) * 4
        + B * A * 4
    )

    return pl.pallas_call(
        _policy_kernel,
        out_shape=jax.ShapeDtypeStruct((B, A), jnp.float32),
        grid=grid,
        in_specs=[
            pl.BlockSpec((tb, S), lambda i: (i, 0)),   # activations: pipelined over batch
            resident(w1), resident(b1),
            resident(w2), resident(b2),
            resident(w3), resident(b3),
        ],
        out_specs=pl.BlockSpec((tb, A), lambda i: (i, 0)),
        compiler_params=pltpu.CompilerParams(
            dimension_semantics=("parallel",),          # shard batch steps across TCs (v7x)
        ),
        cost_estimate=pl.CostEstimate(
            flops=flops,
            transcendentals=B * A,                      # tanh
            bytes_accessed=bytes_accessed,
        ),
    )(x, w1, b1, w2, b2, w3, b3)


def init_params(key, state_dim, action_dim):
    """Deterministic synthetic parameters matching Sequential([state_dim,128,256,action_dim])."""
    dims = [state_dim, H1, H2, action_dim]
    params = []
    for din, dout in zip(dims[:-1], dims[1:]):
        kw, kb, key = jax.random.split(key, 3)
        scale = 1.0 / jnp.sqrt(jnp.float32(din))
        w = jax.random.uniform(kw, (din, dout), jnp.float32, -scale, scale)
        b = jax.random.uniform(kb, (1, dout), jnp.float32, -scale, scale)
        params += [w, b]
    return tuple(params)


def reference_forward_f32(x, params):
    w1, b1, w2, b2, w3, b3 = params
    h1 = jnp.maximum(x @ w1 + b1, 0.0)
    h2 = jnp.maximum(h1 @ w2 + b2, 0.0)
    return jnp.tanh(h2 @ w3 + b3)


def reference_forward_bf16(x, params):
    # Same bf16-operand / f32-accumulate recipe as the kernel, for a tight comparison.
    w1, b1, w2, b2, w3, b3 = params
    bf, f32 = jnp.bfloat16, jnp.float32
    h1 = jnp.maximum(jnp.dot(x.astype(bf), w1.astype(bf), preferred_element_type=f32) + b1, 0.0)
    h2 = jnp.maximum(jnp.dot(h1.astype(bf), w2.astype(bf), preferred_element_type=f32) + b2, 0.0)
    return jnp.tanh(jnp.dot(h2.astype(bf), w3.astype(bf), preferred_element_type=f32) + b3)


if __name__ == "__main__":
    # Small shapes consistent with the module: batch=8, state_dim=16, action_dim=8.
    key = jax.random.PRNGKey(0)
    kx, kx2, kp = jax.random.split(key, 3)
    B, STATE_DIM, ACTION_DIM = 8, 16, 8

    x = jax.random.normal(kx, (B, STATE_DIM), jnp.float32)
    params = init_params(kp, STATE_DIM, ACTION_DIM)
    packed = jax.block_until_ready(pack_params(params))   # one-time prep, outside forward

    # TODO(synk): std != None path (Normal(mean, std) distribution object) has no
    # Pallas equivalent; only the deterministic mean (std=None) forward is kernelized.
    out = continuous_policy_forward(x, packed)
    out = jax.block_until_ready(out)

    assert out.shape == (B, ACTION_DIM)
    ref_bf16 = reference_forward_bf16(x, params)
    ref_f32 = reference_forward_f32(x, params)
    assert jnp.allclose(out, ref_bf16, atol=1e-4, rtol=1e-4), "mismatch vs bf16 reference"
    assert jnp.allclose(out, ref_f32, atol=5e-2, rtol=5e-2), "mismatch vs f32 reference"

    # Secondary check: multi-step ragged grid (exercises the pipelined rollout path,
    # B not a multiple of the tile, even step count for megacore sharding).
    B2 = 2500
    x2 = jax.random.normal(kx2, (B2, STATE_DIM), jnp.float32)
    out2 = jax.block_until_ready(continuous_policy_forward(x2, packed))
    assert out2.shape == (B2, ACTION_DIM)
    ref2 = reference_forward_bf16(x2, params)
    assert jnp.allclose(out2, ref2, atol=1e-4, rtol=1e-4), "mismatch on ragged batch"

    print("KERNEL_OK")
</pallas_src>

<mosaic_0001>
module attributes {stable_mosaic.version = 11 : i64} {
  func.func @_policy_kernel(%arg0: i32, %arg1: memref<8x16xf32, #tpu.memory_space<vmem>>, %arg2: memref<16x128xbf16, #tpu.memory_space<vmem>>, %arg3: memref<1x128xf32, #tpu.memory_space<vmem>>, %arg4: memref<128x256xbf16, #tpu.memory_space<vmem>>, %arg5: memref<1x256xf32, #tpu.memory_space<vmem>>, %arg6: memref<256x8xbf16, #tpu.memory_space<vmem>>, %arg7: memref<1x8xf32, #tpu.memory_space<vmem>>, %arg8: memref<8x8xf32, #tpu.memory_space<vmem>>) attributes {dimension_semantics = [#tpu.dimension_semantics<parallel>], iteration_bounds = array<i64: 1>, scalar_prefetch = 0 : i64, scratch_operands = 0 : i64, tpu.core_type = #tpu.core_type<tc>, window_params = [{transform_indices = @transform_0, window_bounds = array<i64: 8, 16>}, {pipeline_mode = #tpu.pipeline_mode<synchronous>, transform_indices = @transform_1, window_bounds = array<i64: 16, 128>}, {pipeline_mode = #tpu.pipeline_mode<synchronous>, transform_indices = @transform_2, window_bounds = array<i64: 1, 128>}, {pipeline_mode = #tpu.pipeline_mode<synchronous>, transform_indices = @transform_3, window_bounds = array<i64: 128, 256>}, {pipeline_mode = #tpu.pipeline_mode<synchronous>, transform_indices = @transform_4, window_bounds = array<i64: 1, 256>}, {pipeline_mode = #tpu.pipeline_mode<synchronous>, transform_indices = @transform_5, window_bounds = array<i64: 256, 8>}, {pipeline_mode = #tpu.pipeline_mode<synchronous>, transform_indices = @transform_6, window_bounds = array<i64: 1, 8>}, {transform_indices = @transform_7, window_bounds = array<i64: 8, 8>}]} {
    %c0 = arith.constant 0 : index
    %c0_0 = arith.constant 0 : index
    %0 = vector.load %arg1[%c0, %c0_0] : memref<8x16xf32, #tpu.memory_space<vmem>>, vector<8x16xf32>
    %1 = arith.truncf %0 : vector<8x16xf32> to vector<8x16xbf16>
    %c0_1 = arith.constant 0 : index
    %c0_2 = arith.constant 0 : index
    %2 = vector.load %arg2[%c0_1, %c0_2] : memref<16x128xbf16, #tpu.memory_space<vmem>>, vector<16x128xbf16>
    %cst = arith.constant dense<0.000000e+00> : vector<8x128xf32>
    %3 = tpu.matmul %1, %2, %cst {dimension_numbers = #tpu.dot_dimension_numbers<[1], [0], [0], [1], [0, 0, 1, 1], [], []>} : vector<8x16xbf16>, vector<16x128xbf16>, vector<8x128xf32> -> vector<8x128xf32>
    %c0_3 = arith.constant 0 : index
    %c0_4 = arith.constant 0 : index
    %4 = vector.load %arg3[%c0_3, %c0_4] : memref<1x128xf32, #tpu.memory_space<vmem>>, vector<1x128xf32>
    %5 = vector.broadcast %4 : vector<1x128xf32> to vector<8x128xf32>
    %6 = arith.addf %3, %5 : vector<8x128xf32>
    %cst_5 = arith.constant 0.000000e+00 : f32
    %7 = vector.broadcast %cst_5 : f32 to vector<8x128xf32>
    %8 = arith.maximumf %6, %7 : vector<8x128xf32>
    %9 = arith.truncf %8 : vector<8x128xf32> to vector<8x128xbf16>
    %c0_6 = arith.constant 0 : index
    %c0_7 = arith.constant 0 : index
    %10 = vector.load %arg4[%c0_6, %c0_7] : memref<128x256xbf16, #tpu.memory_space<vmem>>, vector<128x256xbf16>
    %cst_8 = arith.constant dense<0.000000e+00> : vector<8x256xf32>
    %11 = tpu.matmul %9, %10, %cst_8 {dimension_numbers = #tpu.dot_dimension_numbers<[1], [0], [0], [1], [0, 0, 1, 1], [], []>} : vector<8x128xbf16>, vector<128x256xbf16>, vector<8x256xf32> -> vector<8x256xf32>
    %c0_9 = arith.constant 0 : index
    %c0_10 = arith.constant 0 : index
    %12 = vector.load %arg5[%c0_9, %c0_10] : memref<1x256xf32, #tpu.memory_space<vmem>>, vector<1x256xf32>
    %13 = vector.broadcast %12 : vector<1x256xf32> to vector<8x256xf32>
    %14 = arith.addf %11, %13 : vector<8x256xf32>
    %cst_11 = arith.constant 0.000000e+00 : f32
    %15 = vector.broadcast %cst_11 : f32 to vector<8x256xf32>
    %16 = arith.maximumf %14, %15 : vector<8x256xf32>
    %17 = arith.truncf %16 : vector<8x256xf32> to vector<8x256xbf16>
    %c0_12 = arith.constant 0 : index
    %c0_13 = arith.constant 0 : index
    %18 = vector.load %arg6[%c0_12, %c0_13] : memref<256x8xbf16, #tpu.memory_space<vmem>>, vector<256x8xbf16>
    %cst_14 = arith.constant dense<0.000000e+00> : vector<8x8xf32>
    %19 = tpu.matmul %17, %18, %cst_14 {dimension_numbers = #tpu.dot_dimension_numbers<[1], [0], [0], [1], [0, 0, 1, 1], [], []>} : vector<8x256xbf16>, vector<256x8xbf16>, vector<8x8xf32> -> vector<8x8xf32>
    %c0_15 = arith.constant 0 : index
    %c0_16 = arith.constant 0 : index
    %20 = vector.load %arg7[%c0_15, %c0_16] : memref<1x8xf32, #tpu.memory_space<vmem>>, vector<1x8xf32>
    %21 = vector.broadcast %20 : vector<1x8xf32> to vector<8x8xf32>
    %22 = arith.addf %19, %21 : vector<8x8xf32>
    %23 = math.tanh %22 : vector<8x8xf32>
    %c0_17 = arith.constant 0 : index
    %c0_18 = arith.constant 0 : index
    %24 = vector.load %arg8[%c0_17, %c0_18] : memref<8x8xf32, #tpu.memory_space<vmem>>, vector<8x8xf32>
    tpu.vector_store %arg8[%c0_17, %c0_18], %23 {strides = array<i32>} : memref<8x8xf32, #tpu.memory_space<vmem>>, vector<8x8xf32>,
    return
  }
  func.func @transform_0(%arg0: i32) -> (i32, i32) {
    %c0_i32 = arith.constant 0 : i32
    %c0_i32_0 = arith.constant 0 : i32
    return %arg0, %c0_i32 : i32, i32
  }
  func.func @transform_1(%arg0: i32) -> (i32, i32) {
    %c0_i32 = arith.constant 0 : i32
    %c0_i32_0 = arith.constant 0 : i32
    %c0_i32_1 = arith.constant 0 : i32
    return %c0_i32, %c0_i32_0 : i32, i32
  }
  func.func @transform_2(%arg0: i32) -> (i32, i32) {
    %c0_i32 = arith.constant 0 : i32
    %c0_i32_0 = arith.constant 0 : i32
    %c0_i32_1 = arith.constant 0 : i32
    return %c0_i32, %c0_i32_0 : i32, i32
  }
  func.func @transform_3(%arg0: i32) -> (i32, i32) {
    %c0_i32 = arith.constant 0 : i32
    %c0_i32_0 = arith.constant 0 : i32
    %c0_i32_1 = arith.constant 0 : i32
    return %c0_i32, %c0_i32_0 : i32, i32
  }
  func.func @transform_4(%arg0: i32) -> (i32, i32) {
    %c0_i32 = arith.constant 0 : i32
    %c0_i32_0 = arith.constant 0 : i32
    %c0_i32_1 = arith.constant 0 : i32
    return %c0_i32, %c0_i32_0 : i32, i32
  }
  func.func @transform_5(%arg0: i32) -> (i32, i32) {
    %c0_i32 = arith.constant 0 : i32
    %c0_i32_0 = arith.constant 0 : i32
    %c0_i32_1 = arith.constant 0 : i32
    return %c0_i32, %c0_i32_0 : i32, i32
  }
  func.func @transform_6(%arg0: i32) -> (i32, i32) {
    %c0_i32 = arith.constant 0 : i32
    %c0_i32_0 = arith.constant 0 : i32
    %c0_i32_1 = arith.constant 0 : i32
    return %c0_i32, %c0_i32_0 : i32, i32
  }
  func.func @transform_7(%arg0: i32) -> (i32, i32) {
    %c0_i32 = arith.constant 0 : i32
    %c0_i32_0 = arith.constant 0 : i32
    return %arg0, %c0_i32 : i32, i32
  }
}

</mosaic_0001>

<llo_original>
// kernel: tpu_custom_call.1
$region0: #{tpu_custom_call.1}
  #allocation0 [shape = 'u32[]', space=smem, size = 0x4, offset = 0x4, fixed_abs, tag = 'smem constant byte address 0x4 - core index']
  #allocation1 [shape = 'u32[72,128]{1,0:T(1,128)}', space=vmem, size = 0x9000, scoped, tag = 'internal scratch']
  %s0 = inlined_call_operand.vmem [shape: f32[8,16], index: 0, kind: input, shape index: {}]
  %s1 = inlined_call_operand.hbm [shape: bf16[16,128], index: 1, kind: input, shape index: {}]
  %s2 = inlined_call_operand.hbm [shape: f32[1,128], index: 2, kind: input, shape index: {}]
  %s3 = inlined_call_operand.vmem [shape: bf16[128,256], index: 3, kind: input, shape index: {}]
  %s4 = inlined_call_operand.vmem [shape: f32[1,256], index: 4, kind: input, shape index: {}]
  %s5 = inlined_call_operand.vmem [shape: bf16[256,8], index: 5, kind: input, shape index: {}]
  %s6 = inlined_call_operand.vmem [shape: f32[1,8], index: 6, kind: input, shape index: {}]
  %s7 = inlined_call_operand.hbm [shape: f32[8,8], index: 7, kind: output, shape index: {}]
  %s8 = sld [smem:[#allocation0]]
  $region46: #{tpu_custom_call.1} parent=0
    _
  %s10 = ssub.s32 1, %s8
  %s11 = scalar_select 0, %s10, %s8
  $region1: #{tpu_custom_call.1} parent=0
    #allocation2 [shape = 'u8[4096]{0}', space=vmem, size = 0x1000, scoped, tag = 'input window, operand 1, single buffered']
    #allocation3 [shape = 's32[1]{0}', space=sflag, size = 0x4, scoped, tag = 'scoped memory for tpu_custom_call.1']
    #allocation4 [shape = 's32[1]{0}', space=sflag, size = 0x4, scoped, tag = 'scoped memory for tpu_custom_call.1']
    #allocation5 [shape = 'u8[512]{0}', space=vmem, size = 0x400, scoped, tag = 'input window, operand 2, single buffered']
    #allocation6 [shape = 's32[1]{0}', space=sflag, size = 0x4, scoped, tag = 'scoped memory for tpu_custom_call.1']
    #allocation7 [shape = 'u8[4096]{0}', space=vmem, size = 0x1000, scoped, tag = 'output window, operand 0, single buffered']
    %12 = vsyncpa [#allocation3], 0
    %13 = vsyncpa [#allocation6], 0
    %14 = vsyncpa [#allocation4], 0
    // Predicated region
    $region2: #{tpu_custom_call.1} parent=1 // pred_check
      _
    $region3: #{tpu_custom_call.1} parent=1 // pred_check_branch
      %16 = sbr.rel (0) target = $region5
    $region4: #{tpu_custom_call.1} parent=1 // pred_region
      _
    $region5: #{tpu_custom_call.1} parent=1 // pred_fallthru
      _
    // Predicated region
    $region6: #{tpu_custom_call.1} parent=1 // pred_check
      _
    $region7: #{tpu_custom_call.1} parent=1 // pred_check_branch
      %18 = sbr.rel (0) target = $region9
    $region8: #{tpu_custom_call.1} parent=1 // pred_region
      %20 = vsyncadd [#allocation3], 0
      %s21 = sshll.u32 %s1, 4
      %s22 = int_to_ptr.hbm [resolvable:$true] %s21
      %s23 = sshll.u32 [#allocation2], 4
      %s24 = int_to_ptr.vmem [resolvable:$true] %s23
      %29 = dma.hbm_to_vmem [thread:$0]  %s22, 128, %s24, [#allocation3], 64, 64, 4
    $region9: #{tpu_custom_call.1} parent=1 // pred_fallthru
      _
    // Predicated region
    $region10: #{tpu_custom_call.1} parent=1 // pred_check
      _
    $region11: #{tpu_custom_call.1} parent=1 // pred_check_branch
      %31 = sbr.rel (0) target = $region13
    $region12: #{tpu_custom_call.1} parent=1 // pred_region
      %33 = vsyncadd [#allocation6], 0
      %s35 = sshll.u32 %s2, 4
      %s36 = int_to_ptr.hbm [resolvable:$true] %s35
      %s37 = sshll.u32 [#allocation5], 4
      %s38 = int_to_ptr.vmem [resolvable:$true] %s37
      %40 = dma.hbm_to_vmem [thread:$0]  %s36, 16, %s38, [#allocation6]
    $region13: #{tpu_custom_call.1} parent=1 // pred_fallthru
      _
    // Predicated region
    $region14: #{tpu_custom_call.1} parent=1 // pred_check
      _
    $region15: #{tpu_custom_call.1} parent=1 // pred_check_branch
      %42 = sbr.rel (0) target = $region17
    $region16: #{tpu_custom_call.1} parent=1 // pred_region
      _
    $region17: #{tpu_custom_call.1} parent=1 // pred_fallthru
      _
    // Predicated region
    $region18: #{tpu_custom_call.1} parent=1 // pred_check
      _
    $region19: #{tpu_custom_call.1} parent=1 // pred_check_branch
      %44 = sbr.rel (0) target = $region21
    $region20: #{tpu_custom_call.1} parent=1 // pred_region
      _
    $region21: #{tpu_custom_call.1} parent=1 // pred_fallthru
      _
    // Predicated region
    $region22: #{tpu_custom_call.1} parent=1 // pred_check
      _
    $region23: #{tpu_custom_call.1} parent=1 // pred_check_branch
      %46 = sbr.rel (0) target = $region25
    $region24: #{tpu_custom_call.1} parent=1 // pred_region
      _
    $region25: #{tpu_custom_call.1} parent=1 // pred_fallthru
      _
    // Predicated region
    $region26: #{tpu_custom_call.1} parent=1 // pred_check
      _
    $region27: #{tpu_custom_call.1} parent=1 // pred_check_branch
      %48 = sbr.rel (0) target = $region29
    $region28: #{tpu_custom_call.1} parent=1 // pred_region
      _
    $region29: #{tpu_custom_call.1} parent=1 // pred_fallthru
      _
    // Predicated region
    $region30: #{tpu_custom_call.1} parent=1 // pred_check
      _
    $region31: #{tpu_custom_call.1} parent=1 // pred_check_branch
      %50 = sbr.rel (0) target = $region33
    $region32: #{tpu_custom_call.1} parent=1 // pred_region
      %52 = dma.done [#allocation3], 128
    $region33: #{tpu_custom_call.1} parent=1 // pred_fallthru
      _
    // Predicated region
    $region34: #{tpu_custom_call.1} parent=1 // pred_check
      _
    $region35: #{tpu_custom_call.1} parent=1 // pred_check_branch
      %54 = sbr.rel (0) target = $region37
    $region36: #{tpu_custom_call.1} parent=1 // pred_region
      %56 = dma.done [#allocation6], 16
    $region37: #{tpu_custom_call.1} parent=1 // pred_fallthru
      _
    %v58 = vld [vmem:[%s0] sm:$0xff]
    %v59 = vpack.c.bf16 %v58, %v58
    %v60 = vld [vmem:[#allocation2] sm:$0xf]
    %v61 = vld [vmem:[#allocation2 + $0x4] sm:$0xf]
    %v62 = vld [vmem:[#allocation5] sm:$0x1]
    %v64 = vperm.slane %v62, 0
    %v68 = vunpack.c.l.b16 %v60
    %v69 = vunpack.c.l.b16 %v61
    %v70 = vpack.c.b16 %v69, %v68
    %vm72 = vcmask 130048
    %v74 = vsel %vm72, %v59, 0
    %76 = vmatpush.bf16.msra.mxu0 0
    %77 = vmatpush.bf16.msra.mxu0 0
    %78 = vmatpush.bf16.msra.mxu0 0
    %79 = vmatpush.bf16.msra.mxu0 0
    %80 = vmatpush.bf16.msra.mxu0 0
    %81 = vmatpush.bf16.msra.mxu0 0
    %82 = vmatpush.bf16.msra.mxu0 0
    %83 = vmatpush.bf16.msra.mxu0 %v70
    %84 = vmatmul.bf16.gmra.mxu0 %v74
    %v85 = vpop.f32.mrf.mxu0
    %v86 = vadd.f32 %v64, %v85
    %v87 = vpop.f32.mrf.mxu0
    %88 = vdwg.mxu0
    %v89 = vmax.f32 %v86, 0.0
    %v90 = vpack.c.bf16 %v89, %v89
    %v91 = vld [vmem:[%s3] sm:$0xff]
    %v92 = vld [vmem:[%s3 + $0x8] sm:$0xff]
    %v93 = vld [vmem:[%s3 + $0x10] sm:$0xff]
    %v94 = vld [vmem:[%s3 + $0x18] sm:$0xff]
    %v95 = vld [vmem:[%s3 + $0x20] sm:$0xff]
    %v96 = vld [vmem:[%s3 + $0x28] sm:$0xff]
    %v97 = vld [vmem:[%s3 + $0x30] sm:$0xff]
    %v98 = vld [vmem:[%s3 + $0x38] sm:$0xff]
    %v99 = vld [vmem:[%s3 + $0x40] sm:$0xff]
    %v100 = vld [vmem:[%s3 + $0x48] sm:$0xff]
    %v101 = vld [vmem:[%s3 + $0x50] sm:$0xff]
    %v102 = vld [vmem:[%s3 + $0x58] sm:$0xff]
    %v103 = vld [vmem:[%s3 + $0x60] sm:$0xff]
    %v104 = vld [vmem:[%s3 + $0x68] sm:$0xff]
    %v105 = vld [vmem:[%s3 + $0x70] sm:$0xff]
    %v106 = vld [vmem:[%s3 + $0x78] sm:$0xff]
    %v107 = vld [vmem:[%s4] sm:$0x3]
    %v109 = vperm.slane %v107, 0
    %v110 = vperm.slane %v107, 1
    %v129 = vunpack.c.l.b16 %v91
    %v130 = vunpack.c.h.b16 %v91
    %v131 = vunpack.c.l.b16 %v92
    %v132 = vunpack.c.h.b16 %v92
    %v133 = vunpack.c.l.b16 %v93
    %v134 = vunpack.c.h.b16 %v93
    %v135 = vunpack.c.l.b16 %v94
    %v136 = vunpack.c.h.b16 %v94
    %v137 = vunpack.c.l.b16 %v95
    %v138 = vunpack.c.h.b16 %v95
    %v139 = vunpack.c.l.b16 %v96
    %v140 = vunpack.c.h.b16 %v96
    %v141 = vunpack.c.l.b16 %v97
    %v142 = vunpack.c.h.b16 %v97
    %v143 = vunpack.c.l.b16 %v98
    %v144 = vunpack.c.h.b16 %v98
    %v145 = vunpack.c.l.b16 %v99
    %v146 = vunpack.c.h.b16 %v99
    %v147 = vunpack.c.l.b16 %v100
    %v148 = vunpack.c.h.b16 %v100
    %v149 = vunpack.c.l.b16 %v101
    %v150 = vunpack.c.h.b16 %v101
    %v151 = vunpack.c.l.b16 %v102
    %v152 = vunpack.c.h.b16 %v102
    %v153 = vunpack.c.l.b16 %v103
    %v154 = vunpack.c.h.b16 %v103
    %v155 = vunpack.c.l.b16 %v104
    %v156 = vunpack.c.h.b16 %v104
    %v157 = vunpack.c.l.b16 %v105
    %v158 = vunpack.c.h.b16 %v105
    %v159 = vunpack.c.l.b16 %v106
    %v160 = vunpack.c.h.b16 %v106
    %v161 = vpack.c.b16 %v131, %v129
    %v162 = vpack.c.b16 %v132, %v130
    %v163 = vpack.c.b16 %v135, %v133
    %v164 = vpack.c.b16 %v136, %v134
    %v165 = vpack.c.b16 %v139, %v137
    %v166 = vpack.c.b16 %v140, %v138
    %v167 = vpack.c.b16 %v143, %v141
    %v168 = vpack.c.b16 %v144, %v142
    %v169 = vpack.c.b16 %v147, %v145
    %v170 = vpack.c.b16 %v148, %v146
    %v171 = vpack.c.b16 %v151, %v149
    %v172 = vpack.c.b16 %v152, %v150
    %v173 = vpack.c.b16 %v155, %v153
    %v174 = vpack.c.b16 %v156, %v154
    %v175 = vpack.c.b16 %v159, %v157
    %v176 = vpack.c.b16 %v160, %v158
    %193 = vmatpush.bf16.msra.mxu0 %v175
    %194 = vmatpush.bf16.msra.mxu0 %v173
    %195 = vmatpush.bf16.msra.mxu0 %v171
    %196 = vmatpush.bf16.msra.mxu0 %v169
    %197 = vmatpush.bf16.msra.mxu0 %v167
    %198 = vmatpush.bf16.msra.mxu0 %v165
    %199 = vmatpush.bf16.msra.mxu0 %v163
    %200 = vmatpush.bf16.msra.mxu0 %v161
    %201 = vmatmul.bf16.gmra.mxu0 %v90
    %v202 = vpop.f32.mrf.mxu0
    %v203 = vadd.f32 %v109, %v202
    %v204 = vpop.f32.mrf.mxu0
    %205 = vdwg.mxu0
    %206 = vmatpush.bf16.msra.mxu0 %v176
    %207 = vmatpush.bf16.msra.mxu0 %v174
    %208 = vmatpush.bf16.msra.mxu0 %v172
    %209 = vmatpush.bf16.msra.mxu0 %v170
    %210 = vmatpush.bf16.msra.mxu0 %v168
    %211 = vmatpush.bf16.msra.mxu0 %v166
    %212 = vmatpush.bf16.msra.mxu0 %v164
    %213 = vmatpush.bf16.msra.mxu0 %v162
    %214 = vmatmul.bf16.gmra.mxu0 %v90
    %v215 = vpop.f32.mrf.mxu0
    %v216 = vadd.f32 %v110, %v215
    %v217 = vpop.f32.mrf.mxu0
    %218 = vdwg.mxu0
    %v219 = vmax.f32 %v203, 0.0
    %v220 = vmax.f32 %v216, 0.0
    %v221 = vpack.c.bf16 %v219, %v219
    %v222 = vpack.c.bf16 %v220, %v220
    %v223 = vld [vmem:[%s5] sm:$0xf]
    %v224 = vld [vmem:[%s5 + $0x4] sm:$0xf]
    %v225 = vld [vmem:[%s5 + $0x8] sm:$0xf]
    %v226 = vld [vmem:[%s5 + $0xc] sm:$0xf]
    %v227 = vld [vmem:[%s5 + $0x10] sm:$0xf]
    %v228 = vld [vmem:[%s5 + $0x14] sm:$0xf]
    %v229 = vld [vmem:[%s5 + $0x18] sm:$0xf]
    %v230 = vld [vmem:[%s5 + $0x1c] sm:$0xf]
    %v231 = vld [vmem:[%s5 + $0x20] sm:$0xf]
    %v232 = vld [vmem:[%s5 + $0x24] sm:$0xf]
    %v233 = vld [vmem:[%s5 + $0x28] sm:$0xf]
    %v234 = vld [vmem:[%s5 + $0x2c] sm:$0xf]
    %v235 = vld [vmem:[%s5 + $0x30] sm:$0xf]
    %v236 = vld [vmem:[%s5 + $0x34] sm:$0xf]
    %v237 = vld [vmem:[%s5 + $0x38] sm:$0xf]
    %v238 = vld [vmem:[%s5 + $0x3c] sm:$0xf]
    %v239 = vld [vmem:[%s5 + $0x40] sm:$0xf]
    %v240 = vld [vmem:[%s5 + $0x44] sm:$0xf]
    %v241 = vld [vmem:[%s5 + $0x48] sm:$0xf]
    %v242 = vld [vmem:[%s5 + $0x4c] sm:$0xf]
    %v243 = vld [vmem:[%s5 + $0x50] sm:$0xf]
    %v244 = vld [vmem:[%s5 + $0x54] sm:$0xf]
    %v245 = vld [vmem:[%s5 + $0x58] sm:$0xf]
    %v246 = vld [vmem:[%s5 + $0x5c] sm:$0xf]
    %v247 = vld [vmem:[%s5 + $0x60] sm:$0xf]
    %v248 = vld [vmem:[%s5 + $0x64] sm:$0xf]
    %v249 = vld [vmem:[%s5 + $0x68] sm:$0xf]
    %v250 = vld [vmem:[%s5 + $0x6c] sm:$0xf]
    %v251 = vld [vmem:[%s5 + $0x70] sm:$0xf]
    %v252 = vld [vmem:[%s5 + $0x74] sm:$0xf]
    %v253 = vld [vmem:[%s5 + $0x78] sm:$0xf]
    %v254 = vld [vmem:[%s5 + $0x7c] sm:$0xf]
    %v255 = vld [vmem:[%s6] sm:$0x1]
    %v257 = vperm.slane %v255, 0
    %v291 = vunpack.c.l.b16 %v223
    %v292 = vunpack.c.l.b16 %v224
    %v293 = vunpack.c.l.b16 %v225
    %v294 = vunpack.c.l.b16 %v226
    %v295 = vunpack.c.l.b16 %v227
    %v296 = vunpack.c.l.b16 %v228
    %v297 = vunpack.c.l.b16 %v229
    %v298 = vunpack.c.l.b16 %v230
    %v299 = vunpack.c.l.b16 %v231
    %v300 = vunpack.c.l.b16 %v232
    %v301 = vunpack.c.l.b16 %v233
    %v302 = vunpack.c.l.b16 %v234
    %v303 = vunpack.c.l.b16 %v235
    %v304 = vunpack.c.l.b16 %v236
    %v305 = vunpack.c.l.b16 %v237
    %v306 = vunpack.c.l.b16 %v238
    %v307 = vunpack.c.l.b16 %v239
    %v308 = vunpack.c.l.b16 %v240
    %v309 = vunpack.c.l.b16 %v241
    %v310 = vunpack.c.l.b16 %v242
    %v311 = vunpack.c.l.b16 %v243
    %v312 = vunpack.c.l.b16 %v244
    %v313 = vunpack.c.l.b16 %v245
    %v314 = vunpack.c.l.b16 %v246
    %v315 = vunpack.c.l.b16 %v247
    %v316 = vunpack.c.l.b16 %v248
    %v317 = vunpack.c.l.b16 %v249
    %v318 = vunpack.c.l.b16 %v250
    %v319 = vunpack.c.l.b16 %v251
    %v320 = vunpack.c.l.b16 %v252
    %v321 = vunpack.c.l.b16 %v253
    %v322 = vunpack.c.l.b16 %v254
    %v323 = vpack.c.b16 %v292, %v291
    %v324 = vpack.c.b16 %v294, %v293
    %v325 = vpack.c.b16 %v296, %v295
    %v326 = vpack.c.b16 %v298, %v297
    %v327 = vpack.c.b16 %v300, %v299
    %v328 = vpack.c.b16 %v302, %v301
    %v329 = vpack.c.b16 %v304, %v303
    %v330 = vpack.c.b16 %v306, %v305
    %v331 = vpack.c.b16 %v308, %v307
    %v332 = vpack.c.b16 %v310, %v309
    %v333 = vpack.c.b16 %v312, %v311
    %v334 = vpack.c.b16 %v314, %v313
    %v335 = vpack.c.b16 %v316, %v315
    %v336 = vpack.c.b16 %v318, %v317
    %v337 = vpack.c.b16 %v320, %v319
    %v338 = vpack.c.b16 %v322, %v321
    %355 = vmatpush.bf16.msra.mxu0 %v330
    %356 = vmatpush.bf16.msra.mxu0 %v329
    %357 = vmatpush.bf16.msra.mxu0 %v328
    %358 = vmatpush.bf16.msra.mxu0 %v327
    %359 = vmatpush.bf16.msra.mxu0 %v326
    %360 = vmatpush.bf16.msra.mxu0 %v325
    %361 = vmatpush.bf16.msra.mxu0 %v324
    %362 = vmatpush.bf16.msra.mxu0 %v323
    %363 = vmatmul.bf16.gmra.mxu0 %v221
    %v364 = vpop.f32.mrf.mxu0
    %v365 = vadd.f32 %v257, %v364
    %v366 = vpop.f32.mrf.mxu0
    %367 = vdwg.mxu0
    %368 = vmatpush.bf16.msra.mxu0 %v338
    %369 = vmatpush.bf16.msra.mxu0 %v337
    %370 = vmatpush.bf16.msra.mxu0 %v336
    %371 = vmatpush.bf16.msra.mxu0 %v335
    %372 = vmatpush.bf16.msra.mxu0 %v334
    %373 = vmatpush.bf16.msra.mxu0 %v333
    %374 = vmatpush.bf16.msra.mxu0 %v332
    %375 = vmatpush.bf16.msra.mxu0 %v331
    %376 = vmatmul.bf16.gmra.mxu0 %v222
    %v377 = vpop.f32.mrf.mxu0
    %v378 = vadd.f32 %v365, %v377
    %v379 = vpop.f32.mrf.mxu0
    %380 = vdwg.mxu0
    %v381 = vtanh.pop %v378
    %vm382 = vcmask 64512
    %383 = vst.msk [vmem:[#allocation7] sm:$0xff] %vm382, %v381
    // Predicated region
    $region38: #{tpu_custom_call.1} parent=1 // pred_check
      _
    $region39: #{tpu_custom_call.1} parent=1 // pred_check_branch
      %385 = sbr.rel (0) target = $region41
    $region40: #{tpu_custom_call.1} parent=1 // pred_region
      %387 = vsyncadd [#allocation4], 0
      %s389 = sshll.u32 [#allocation7], 4
      %s390 = int_to_ptr.vmem [resolvable:$true] %s389
      %s391 = sshll.u32 %s7, 4
      %s392 = int_to_ptr.hbm [resolvable:$true] %s391
      %394 = dma.vmem_to_hbm [thread:$0]  %s390, 128, %s392, [#allocation4]
    $region41: #{tpu_custom_call.1} parent=1 // pred_fallthru
      _
    // Predicated region
    $region42: #{tpu_custom_call.1} parent=1 // pred_check
      _
    $region43: #{tpu_custom_call.1} parent=1 // pred_check_branch
      %396 = sbr.rel (0) target = $region45
    $region44: #{tpu_custom_call.1} parent=1 // pred_region
      %398 = dma.done [#allocation4], 128
    $region45: #{tpu_custom_call.1} parent=1 // pred_fallthru
      _
    %399 = vsyncpa [#allocation3], 1
    %400 = vsyncpa [#allocation6], 1
    %401 = vsyncpa [#allocation4], 1

</llo_original>
